<compile_context>
chip_gen: v6e
topology: v6e:2x2x1
jax: 0.10.0
libtpu: 0.0.40
codegen_flags: <defaults>
</compile_context>

<pallas_src>
from functools import partial

import jax
import jax.numpy as jnp
from jax.experimental import pallas as pl
from jax.experimental.pallas import tpu as pltpu

NORM_EPS = 1e-5
_MAX_BATCH_TILE = 8  # cap on images per grid step (limits static unrolling)


# --------------------------------------------------------------------------- utilities

def _pad8(n):
    return -(-n // 8) * 8


def _pad128(n):
    return -(-n // 128) * 128


def _divisors(n):
    return [d for d in range(1, n + 1) if n % d == 0]


def _vmem_caps():
    """(scoped vmem limit to request, per-step planning budget), generation aware."""
    try:
        cap = pltpu.get_tpu_info().vmem_capacity_bytes
    except Exception:
        cap = 64 * 1024 * 1024  # conservative (v7x-sized) fallback
    limit = int(cap * 0.75)     # e.g. 96 MiB on v5e/v6e, 48 MiB on v7x
    budget = int(cap * 0.40)    # tile planner target (includes 2x buffers + f32 temps)
    return limit, budget


def _pool_footprint(tn, cin, th, dw, wo, isz):
    in_t = tn * cin * _pad8(th) * _pad128(dw) * isz
    out_t = tn * cin * _pad8(th) * _pad128(wo) * isz
    tmp = cin * _pad8(th) * _pad128(wo) * 4          # f32 MXU result (one image at a time)
    return 2 * (in_t + out_t) + tmp


def _proj_footprint(tn, cin, cout, tp, isz):
    in_t = tn * _pad8(cin) * _pad128(tp) * isz
    out_t = tn * _pad8(cout) * _pad128(tp) * isz
    w_t = _pad8(cout) * _pad128(cin) * isz + _pad8(cout) * 128 * 4
    tmp = _pad8(cout) * _pad128(tp) * 4               # f32 matmul result
    return 2 * (in_t + out_t) + tmp + 2 * w_t


def _choose_pool_tiles(n, cin, ho, wo, dw, isz, budget):
    cands = list(range(8, (ho // 8) * 8 + 1, 8)) if ho >= 8 else [ho]
    th = cands[0]
    for t in cands:                                   # largest row tile under budget
        if _pool_footprint(1, cin, t, dw, wo, isz) <= budget:
            th = t
    tn = 1
    for d in _divisors(n):                            # then grow the batch tile
        if d <= _MAX_BATCH_TILE and _pool_footprint(d, cin, th, dw, wo, isz) <= budget:
            tn = d

    def steps(tn_, th_):
        return (n // tn_) * (-(-ho // th_))

    while steps(tn, th) < 2 and tn > 1:               # keep >= 2 grid steps when possible
        tn = max(d for d in _divisors(n) if d < tn)
    idx = cands.index(th)
    while steps(tn, th) < 2 and idx > 0:
        idx -= 1
        th = cands[idx]
    return tn, th


def _choose_proj_tiles(n, cin, cout, npix, isz, budget):
    cands = sorted(set(list(range(128, npix, 128)) + [npix]))
    tp = cands[0]
    for t in cands:
        if _proj_footprint(1, cin, cout, t, isz) <= budget:
            tp = t
    tn = 1
    for d in _divisors(n):
        if d <= _MAX_BATCH_TILE and _proj_footprint(d, cin, cout, tp, isz) <= budget:
            tn = d

    def steps(tn_, tp_):
        return (n // tn_) * (-(-npix // tp_))

    while steps(tn, tp) < 2 and tn > 1:
        tn = max(d for d in _divisors(n) if d < tn)
    idx = cands.index(tp)
    while steps(tn, tp) < 2 and idx > 0:
        idx -= 1
        tp = cands[idx]
    return tn, tp


# ----------------------------------------------------------------------------- kernels

def _pool_kernel(x_ref, p_ref, z_ref):
    # x_ref : (tn, Cin, th, 2W)  NCHW tile; each fused row = the two input rows of a window
    # p_ref : (2W, Wo)           0/1 pooling matrix (sums the 2x2 window on the MXU)
    # z_ref : (tn, Cin, th, Wo)  pooled NCHW tile (window sums)
    tn, cin, th, dw = x_ref.shape
    wo = p_ref.shape[1]
    for i in range(tn):
        if th % 8 == 0:
            # layout-preserving merge/split reshapes only (th is a multiple of 8)
            t = x_ref[i].reshape(cin * th, dw)
            pooled = jnp.dot(t, p_ref[...], preferred_element_type=jnp.float32)
            z_ref[i] = pooled.reshape(cin, th, wo).astype(z_ref.dtype)
        else:
            # tiny-row fallback (Ho < 8): per-row dot avoids a non-layout-preserving reshape
            for j in range(th):
                pooled = jnp.dot(x_ref[i, :, j, :], p_ref[...],
                                 preferred_element_type=jnp.float32)
                z_ref[i, :, j, :] = pooled.astype(z_ref.dtype)


def _proj_kernel(z_ref, w_ref, b_ref, o_ref):
    # z_ref : (tn, Cin, tP)   pooled activations, pixels lane-dense
    # w_ref : (Cout, Cin)     0.25 * BN-scale folded 1x1-conv weight
    # b_ref : (Cout, 1)       BN shift (beta - mean*scale), f32
    # o_ref : (tn, Cout, tP)  NCHW output tile
    tn = z_ref.shape[0]
    for i in range(tn):
        y = jnp.dot(w_ref[...], z_ref[i], preferred_element_type=jnp.float32)
        o_ref[i] = (y + b_ref[...]).astype(o_ref.dtype)


# ----------------------------------------------------------------------------- wrapper

def _project(z2, w_fold, bias, n, cin, cout, npix, isz, limit, budget):
    tn, tp = _choose_proj_tiles(n, cin, cout, npix, isz, budget)
    return pl.pallas_call(
        _proj_kernel,
        out_shape=jax.ShapeDtypeStruct((n, cout, npix), z2.dtype),
        grid_spec=pltpu.PrefetchScalarGridSpec(
            num_scalar_prefetch=0,
            grid=(n // tn, pl.cdiv(npix, tp)),
            in_specs=[
                pl.BlockSpec((tn, cin, tp), lambda i, p: (i, 0, p)),
                pl.BlockSpec((cout, cin), lambda i, p: (0, 0)),
                pl.BlockSpec((cout, 1), lambda i, p: (0, 0)),
            ],
            out_specs=pl.BlockSpec((tn, cout, tp), lambda i, p: (i, 0, p)),
        ),
        compiler_params=pltpu.CompilerParams(
            dimension_semantics=("parallel", "parallel"),
            vmem_limit_bytes=limit,
        ),
    )(z2, w_fold, bias)


@partial(jax.jit, static_argnames=("stride",))
def patch_embed(x, conv_w, gamma, beta, run_mean, run_var, *, stride=2):
    """NextViT PatchEmbed forward (BatchNorm in eval mode, running statistics)."""
    N, Cin, H, W = x.shape
    Cout = conv_w.shape[0]

    if stride != 2 and Cin == Cout:                       # identity branch
        return x

    isz = jnp.dtype(x.dtype).itemsize
    limit, budget = _vmem_caps()

    # Fold BatchNorm (eval) into the 1x1 conv: scale into weight, shift into bias.
    scale = gamma.astype(jnp.float32) * jax.lax.rsqrt(run_var.astype(jnp.float32) + NORM_EPS)
    bias = (beta.astype(jnp.float32) - run_mean.astype(jnp.float32) * scale).reshape(Cout, 1)
    w2d = conv_w.reshape(Cout, Cin).astype(jnp.float32) * scale[:, None]

    if stride == 2:
        if H % 2 or W % 2:
            # ceil_mode=True + count_include_pad=False == edge-replicate to even dims.
            ph, pw = H % 2, W % 2
            x = jnp.pad(x, ((0, 0), (0, 0), (0, ph), (0, pw)), mode="edge")
            H, W = H + ph, W + pw
        Ho, Wo, DW = H // 2, W // 2, 2 * W
        w_fold = (w2d * 0.25).astype(x.dtype)             # AvgPool mean folded into weight
        # 0/1 pooling matrix: fused-row lane j -> output column (j % W) // 2
        col = (jnp.arange(DW) % W) // 2
        pool_mat = (col[:, None] == jnp.arange(Wo)[None, :]).astype(x.dtype)

        tn1, th1 = _choose_pool_tiles(N, Cin, Ho, Wo, DW, isz, budget)
        z = pl.pallas_call(
            _pool_kernel,
            out_shape=jax.ShapeDtypeStruct((N, Cin, Ho, Wo), x.dtype),
            grid_spec=pltpu.PrefetchScalarGridSpec(
                num_scalar_prefetch=0,
                grid=(N // tn1, pl.cdiv(Ho, th1)),
                in_specs=[
                    pl.BlockSpec((tn1, Cin, th1, DW), lambda i, r: (i, 0, r, 0)),
                    pl.BlockSpec((DW, Wo), lambda i, r: (0, 0)),
                ],
                out_specs=pl.BlockSpec((tn1, Cin, th1, Wo), lambda i, r: (i, 0, r, 0)),
            ),
            compiler_params=pltpu.CompilerParams(
                dimension_semantics=("parallel", "parallel"),
                vmem_limit_bytes=limit,
            ),
        )(x.reshape(N, Cin, Ho, DW), pool_mat)            # pure view, no data movement
        feat, out_h, out_w = z, Ho, Wo
    else:
        w_fold = w2d.astype(x.dtype)
        feat, out_h, out_w = x, H, W

    npix = out_h * out_w
    y = _project(feat.reshape(N, Cin, npix), w_fold, bias, N, Cin, Cout, npix, isz,
                 limit, budget)
    return y.reshape(N, Cout, out_h, out_w)               # already NCHW, no transpose


# --------------------------------------------------------------------------- reference

def _reference_stride2(x, conv_w, gamma, beta, run_mean, run_var):
    N, Cin, H, W = x.shape
    Cout = conv_w.shape[0]
    pooled = x.reshape(N, Cin, H // 2, 2, W // 2, 2).mean(axis=(3, 5))
    y = jnp.einsum("nchw,oc->nohw", pooled, conv_w.reshape(Cout, Cin))
    g, b = gamma.reshape(1, Cout, 1, 1), beta.reshape(1, Cout, 1, 1)
    m, v = run_mean.reshape(1, Cout, 1, 1), run_var.reshape(1, Cout, 1, 1)
    return (y - m) / jnp.sqrt(v + NORM_EPS) * g + b


def _reference_stride1(x, conv_w, gamma, beta, run_mean, run_var):
    N, Cin, H, W = x.shape
    Cout = conv_w.shape[0]
    y = jnp.einsum("nchw,oc->nohw", x, conv_w.reshape(Cout, Cin))
    g, b = gamma.reshape(1, Cout, 1, 1), beta.reshape(1, Cout, 1, 1)
    m, v = run_mean.reshape(1, Cout, 1, 1), run_var.reshape(1, Cout, 1, 1)
    return (y - m) / jnp.sqrt(v + NORM_EPS) * g + b


if __name__ == "__main__":
    key = jax.random.PRNGKey(0)
    k_x, k_w, k_g, k_b, k_m, k_v = jax.random.split(key, 6)

    N, Cin, H, W = 2, 4, 16, 16
    Cout = 8

    x = jax.random.normal(k_x, (N, Cin, H, W), jnp.float32)
    conv_w = jax.random.normal(k_w, (Cout, Cin, 1, 1), jnp.float32) * 0.1
    gamma = 1.0 + 0.1 * jax.random.normal(k_g, (Cout,), jnp.float32)
    beta = 0.1 * jax.random.normal(k_b, (Cout,), jnp.float32)
    run_mean = 0.1 * jax.random.normal(k_m, (Cout,), jnp.float32)
    run_var = jax.random.uniform(k_v, (Cout,), jnp.float32, 0.5, 1.5)

    # stride=2 branch: AvgPool(2,2) -> 1x1 conv -> BN
    out2 = jax.block_until_ready(
        patch_embed(x, conv_w, gamma, beta, run_mean, run_var, stride=2))
    ref2 = _reference_stride2(x, conv_w, gamma, beta, run_mean, run_var)
    assert out2.shape == (N, Cout, H // 2, W // 2)
    assert jnp.allclose(out2, ref2, atol=2e-5, rtol=2e-5), "stride=2 mismatch vs reference"

    # stride=1, Cin != Cout branch: 1x1 conv -> BN
    out1 = jax.block_until_ready(
        patch_embed(x, conv_w, gamma, beta, run_mean, run_var, stride=1))
    ref1 = _reference_stride1(x, conv_w, gamma, beta, run_mean, run_var)
    assert out1.shape == (N, Cout, H, W)
    assert jnp.allclose(out1, ref1, atol=2e-5, rtol=2e-5), "stride=1 mismatch vs reference"

    print("KERNEL_OK")
</pallas_src>

<mosaic_0001>
module attributes {stable_mosaic.version = 11 : i64} {
  func.func @_pool_kernel(%arg0: i32, %arg1: i32, %arg2: memref<1x4x8x32xf32, #tpu.memory_space<vmem>>, %arg3: memref<32x8xf32, #tpu.memory_space<vmem>>, %arg4: memref<1x4x8x8xf32, #tpu.memory_space<vmem>>) attributes {dimension_semantics = [#tpu.dimension_semantics<parallel>, #tpu.dimension_semantics<parallel>], iteration_bounds = array<i64: 2, 1>, scalar_prefetch = 0 : i64, scratch_operands = 0 : i64, tpu.core_type = #tpu.core_type<tc>, window_params = [{transform_indices = @transform_0, window_bounds = array<i64: 1, 4, 8, 32>}, {pipeline_mode = #tpu.pipeline_mode<synchronous>, transform_indices = @transform_1, window_bounds = array<i64: 32, 8>}, {transform_indices = @transform_2, window_bounds = array<i64: 1, 4, 8, 8>}]} {
    %c0 = arith.constant 0 : index
    %c0_0 = arith.constant 0 : index
    %c0_1 = arith.constant 0 : index
    %c0_2 = arith.constant 0 : index
    %0 = vector.load %arg2[%c0, %c0_0, %c0_1, %c0_2] : memref<1x4x8x32xf32, #tpu.memory_space<vmem>>, vector<1x4x8x32xf32>
    %1 = vector.shape_cast %0 : vector<1x4x8x32xf32> to vector<4x8x32xf32>
    %2 = vector.shape_cast %1 : vector<4x8x32xf32> to vector<32x32xf32>
    %c0_3 = arith.constant 0 : index
    %c0_4 = arith.constant 0 : index
    %3 = vector.load %arg3[%c0_3, %c0_4] : memref<32x8xf32, #tpu.memory_space<vmem>>, vector<32x8xf32>
    %cst = arith.constant dense<0.000000e+00> : vector<32x8xf32>
    %4 = tpu.matmul %2, %3, %cst {dimension_numbers = #tpu.dot_dimension_numbers<[1], [0], [0], [1], [0, 0, 1, 1], [], []>} : vector<32x32xf32>, vector<32x8xf32>, vector<32x8xf32> -> vector<32x8xf32>
    %5 = vector.shape_cast %4 : vector<32x8xf32> to vector<4x8x8xf32>
    %c0_5 = arith.constant 0 : index
    %c0_6 = arith.constant 0 : index
    %c0_7 = arith.constant 0 : index
    %c0_8 = arith.constant 0 : index
    %6 = vector.load %arg4[%c0_5, %c0_6, %c0_7, %c0_8] : memref<1x4x8x8xf32, #tpu.memory_space<vmem>>, vector<1x4x8x8xf32>
    %7 = vector.shape_cast %6 : vector<1x4x8x8xf32> to vector<4x8x8xf32>
    %8 = vector.shape_cast %5 : vector<4x8x8xf32> to vector<1x4x8x8xf32>
    tpu.vector_store %arg4[%c0_5, %c0_6, %c0_7, %c0_8], %8 {strides = array<i32>} : memref<1x4x8x8xf32, #tpu.memory_space<vmem>>, vector<1x4x8x8xf32>,
    return
  }
  func.func @transform_0(%arg0: i32, %arg1: i32) -> (i32, i32, i32, i32) {
    %c0_i32 = arith.constant 0 : i32
    %c0_i32_0 = arith.constant 0 : i32
    %c0_i32_1 = arith.constant 0 : i32
    return %arg0, %c0_i32, %arg1, %c0_i32_0 : i32, i32, i32, i32
  }
  func.func @transform_1(%arg0: i32, %arg1: i32) -> (i32, i32) {
    %c0_i32 = arith.constant 0 : i32
    %c0_i32_0 = arith.constant 0 : i32
    %c0_i32_1 = arith.constant 0 : i32
    return %c0_i32, %c0_i32_0 : i32, i32
  }
  func.func @transform_2(%arg0: i32, %arg1: i32) -> (i32, i32, i32, i32) {
    %c0_i32 = arith.constant 0 : i32
    %c0_i32_0 = arith.constant 0 : i32
    %c0_i32_1 = arith.constant 0 : i32
    return %arg0, %c0_i32, %arg1, %c0_i32_0 : i32, i32, i32, i32
  }
}

module attributes {stable_mosaic.version = 11 : i64} {
  func.func @_proj_kernel(%arg0: i32, %arg1: i32, %arg2: memref<1x4x64xf32, #tpu.memory_space<vmem>>, %arg3: memref<8x4xf32, #tpu.memory_space<vmem>>, %arg4: memref<8x1xf32, #tpu.memory_space<vmem>>, %arg5: memref<1x8x64xf32, #tpu.memory_space<vmem>>) attributes {dimension_semantics = [#tpu.dimension_semantics<parallel>, #tpu.dimension_semantics<parallel>], iteration_bounds = array<i64: 2, 1>, scalar_prefetch = 0 : i64, scratch_operands = 0 : i64, tpu.core_type = #tpu.core_type<tc>, window_params = [{transform_indices = @transform_0, window_bounds = array<i64: 1, 4, 64>}, {pipeline_mode = #tpu.pipeline_mode<synchronous>, transform_indices = @transform_1, window_bounds = array<i64: 8, 4>}, {pipeline_mode = #tpu.pipeline_mode<synchronous>, transform_indices = @transform_2, window_bounds = array<i64: 8, 1>}, {transform_indices = @transform_3, window_bounds = array<i64: 1, 8, 64>}]} {
    %c0 = arith.constant 0 : index
    %c0_0 = arith.constant 0 : index
    %0 = vector.load %arg3[%c0, %c0_0] : memref<8x4xf32, #tpu.memory_space<vmem>>, vector<8x4xf32>
    %c0_1 = arith.constant 0 : index
    %c0_2 = arith.constant 0 : index
    %c0_3 = arith.constant 0 : index
    %1 = vector.load %arg2[%c0_1, %c0_2, %c0_3] : memref<1x4x64xf32, #tpu.memory_space<vmem>>, vector<1x4x64xf32>
    %2 = vector.shape_cast %1 : vector<1x4x64xf32> to vector<4x64xf32>
    %cst = arith.constant dense<0.000000e+00> : vector<8x64xf32>
    %3 = tpu.matmul %0, %2, %cst {dimension_numbers = #tpu.dot_dimension_numbers<[1], [0], [0], [1], [0, 0, 1, 1], [], []>} : vector<8x4xf32>, vector<4x64xf32>, vector<8x64xf32> -> vector<8x64xf32>
    %c0_4 = arith.constant 0 : index
    %c0_5 = arith.constant 0 : index
    %4 = vector.load %arg4[%c0_4, %c0_5] : memref<8x1xf32, #tpu.memory_space<vmem>>, vector<8x1xf32>
    %5 = vector.broadcast %4 : vector<8x1xf32> to vector<8x64xf32>
    %6 = arith.addf %3, %5 : vector<8x64xf32>
    %c0_6 = arith.constant 0 : index
    %c0_7 = arith.constant 0 : index
    %c0_8 = arith.constant 0 : index
    %7 = vector.load %arg5[%c0_6, %c0_7, %c0_8] : memref<1x8x64xf32, #tpu.memory_space<vmem>>, vector<1x8x64xf32>
    %8 = vector.shape_cast %7 : vector<1x8x64xf32> to vector<8x64xf32>
    %9 = vector.shape_cast %6 : vector<8x64xf32> to vector<1x8x64xf32>
    tpu.vector_store %arg5[%c0_6, %c0_7, %c0_8], %9 {strides = array<i32>} : memref<1x8x64xf32, #tpu.memory_space<vmem>>, vector<1x8x64xf32>,
    return
  }
  func.func @transform_0(%arg0: i32, %arg1: i32) -> (i32, i32, i32) {
    %c0_i32 = arith.constant 0 : i32
    %c0_i32_0 = arith.constant 0 : i32
    return %arg0, %c0_i32, %arg1 : i32, i32, i32
  }
  func.func @transform_1(%arg0: i32, %arg1: i32) -> (i32, i32) {
    %c0_i32 = arith.constant 0 : i32
    %c0_i32_0 = arith.constant 0 : i32
    %c0_i32_1 = arith.constant 0 : i32
    return %c0_i32, %c0_i32_0 : i32, i32
  }
  func.func @transform_2(%arg0: i32, %arg1: i32) -> (i32, i32) {
    %c0_i32 = arith.constant 0 : i32
    %c0_i32_0 = arith.constant 0 : i32
    %c0_i32_1 = arith.constant 0 : i32
    return %c0_i32, %c0_i32_0 : i32, i32
  }
  func.func @transform_3(%arg0: i32, %arg1: i32) -> (i32, i32, i32) {
    %c0_i32 = arith.constant 0 : i32
    %c0_i32_0 = arith.constant 0 : i32
    return %arg0, %c0_i32, %arg1 : i32, i32, i32
  }
}

</mosaic_0001>

<llo_original>
// kernel: patch_embed.3
$region0: #{patch_embed.3}
  #allocation0 [shape = 'u32[]', space=smem, size = 0x4, offset = 0x4, fixed_abs, tag = 'smem constant byte address 0x4 - core index']
  #allocation1 [shape = 'u32[144,128]{1,0:T(1,128)}', space=vmem, size = 0x12000, scoped, tag = 'internal scratch']
  %s0 = inlined_call_operand.vmem [shape: f32[2,4,64], index: 0, kind: input, shape index: {}]
  %s1 = inlined_call_operand.vmem [shape: f32[8,4], index: 1, kind: input, shape index: {}]
  %s2 = inlined_call_operand.vmem [shape: f32[8,1], index: 2, kind: input, shape index: {}]
  %s3 = inlined_call_operand.vmem [shape: f32[2,8,64], index: 3, kind: output, shape index: {}]
  %s4 = sld [smem:[#allocation0]]
  $region45: #{patch_embed.3} parent=0
    _
  %s6 = ssub.s32 1, %s4
  %s7 = scalar_select 0, %s6, %s4
  loop: start=0, step=1, limit=4
  $region2: #{patch_embed.3} parent=0 // loop_pre_header
    _
  $region3: #{patch_embed.3} parent=0 // loop_header
    %s9 = sphi 0, %s13
    %p10 = scmp.ge.s32.totalorder %s9, 4
    %s16 = sphi 0, %s28
    %s17 = sphi 0, %s24
    %s18 = sphi 0, %s16
    %s19 = sphi 0, %s17
    %s20 = sphi 0, %s18
    %s21 = sphi 0, %s19
    %s33 = sphi 0, %s35
    %s36 = sphi 0, %s33
    %s37 = sphi 0, %s36
    %s53 = sphi 0, %s37
    %s57 = sphi 0, %s57
    %s59 = sphi 0, %s57
    %s60 = sphi 0, %s59
    %s74 = sphi 0, %s60
    %s78 = sphi 0, %s78
    %s80 = sphi 0, %s78
    %s81 = sphi 0, %s80
    %s95 = sphi 0, %s81
    %s103 = sphi 0, %s105
    %s106 = sphi 0, %s103
    %s107 = sphi 0, %s106
    %s123 = sphi 0, %s107
  $region4: #{patch_embed.3} parent=0 // loop_header_branch
    %12 = sbr.rel (%p10) target = $region8
  $region5: #{patch_embed.3} parent=0 // loop_body
    %s14 = ssub.s32 %s9, 1
    %s15 = ssub.s32 %s9, 2
    %s22 = sadd.s32 1, %s17
    %p23 = scmp.ge.s32.totalorder %s22, 1
    %s24 = scalar_select %p23, 0, %s22
    %s25 = sadd.s32 1, %s16
    %s26 = scalar_select %p23, %s25, %s16
    %p27 = scmp.ge.s32.totalorder %s26, 2
    %s28 = scalar_select %p27, 0, %s26
    %s29 = ssub.s32 %s16, %s28
    %s30 = ssub.s32 %s17, %s24
    %s31 = sor.u32 %s29, %s30
    %p32 = scmp.eq.s32.totalorder %s31, 0
    %s34 = sadd.s32 %s33, 1
    %s35 = scalar_select %p32, %s33, %s34
    %p38 = pneg %p32
    %p39 = scmp.eq.s32.totalorder %s9, 1
    %p40 = por %p38, %p39
    %p41 = scmp.ne.s32.totalorder %s33, %s36
    %p42 = scmp.eq.s32.totalorder %s9, 0
    %p43 = por %p41, %p42
    %p44 = scmp.ne.s32.totalorder %s33, %s36
    %p45 = scmp.eq.s32.totalorder %s14, 1
    %p46 = por %p44, %p45
    %p47 = scmp.ne.s32.totalorder %s36, %s37
    %p48 = scmp.eq.s32.totalorder %s14, 0
    %p49 = por %p47, %p48
    %p50 = scmp.ne.s32.totalorder %s36, %s37
    %p51 = scmp.eq.s32.totalorder %s15, 1
    %p52 = por %p50, %p51
    %p54 = scmp.ne.s32.totalorder %s37, %s53
    %p55 = scmp.eq.s32.totalorder %s15, 0
    %p56 = por %p54, %p55
    %s58 = sadd.s32 %s57, 1
    %p61 = scmp.eq.s32.totalorder %s9, 1
    %p62 = scmp.ne.s32.totalorder %s57, %s59
    %p63 = scmp.eq.s32.totalorder %s9, 0
    %p64 = por %p62, %p63
    %p65 = scmp.ne.s32.totalorder %s57, %s59
    %p66 = scmp.eq.s32.totalorder %s14, 1
    %p67 = por %p65, %p66
    %p68 = scmp.ne.s32.totalorder %s59, %s60
    %p69 = scmp.eq.s32.totalorder %s14, 0
    %p70 = por %p68, %p69
    %p71 = scmp.ne.s32.totalorder %s59, %s60
    %p72 = scmp.eq.s32.totalorder %s15, 1
    %p73 = por %p71, %p72
    %p75 = scmp.ne.s32.totalorder %s60, %s74
    %p76 = scmp.eq.s32.totalorder %s15, 0
    %p77 = por %p75, %p76
    %s79 = sadd.s32 %s78, 1
    %p82 = scmp.eq.s32.totalorder %s9, 1
    %p83 = scmp.ne.s32.totalorder %s78, %s80
    %p84 = scmp.eq.s32.totalorder %s9, 0
    %p85 = por %p83, %p84
    %p86 = scmp.ne.s32.totalorder %s78, %s80
    %p87 = scmp.eq.s32.totalorder %s14, 1
    %p88 = por %p86, %p87
    %p89 = scmp.ne.s32.totalorder %s80, %s81
    %p90 = scmp.eq.s32.totalorder %s14, 0
    %p91 = por %p89, %p90
    %p92 = scmp.ne.s32.totalorder %s80, %s81
    %p93 = scmp.eq.s32.totalorder %s15, 1
    %p94 = por %p92, %p93
    %p96 = scmp.ne.s32.totalorder %s81, %s95
    %p97 = scmp.eq.s32.totalorder %s15, 0
    %p98 = por %p96, %p97
    %s99 = ssub.s32 %s16, %s28
    %s100 = ssub.s32 %s17, %s24
    %s101 = sor.u32 %s99, %s100
    %p102 = scmp.eq.s32.totalorder %s101, 0
    %s104 = sadd.s32 %s103, 1
    %s105 = scalar_select %p102, %s103, %s104
    %p108 = pneg %p102
    %p109 = scmp.eq.s32.totalorder %s9, 1
    %p110 = por %p108, %p109
    %p111 = scmp.ne.s32.totalorder %s103, %s106
    %p112 = scmp.eq.s32.totalorder %s9, 0
    %p113 = por %p111, %p112
    %p114 = scmp.ne.s32.totalorder %s103, %s106
    %p115 = scmp.eq.s32.totalorder %s14, 1
    %p116 = por %p114, %p115
    %p117 = scmp.ne.s32.totalorder %s106, %s107
    %p118 = scmp.eq.s32.totalorder %s14, 0
    %p119 = por %p117, %p118
    %p120 = scmp.ne.s32.totalorder %s106, %s107
    %p121 = scmp.eq.s32.totalorder %s15, 1
    %p122 = por %p120, %p121
    %p124 = scmp.ne.s32.totalorder %s107, %s123
    %p125 = scmp.eq.s32.totalorder %s15, 0
    %p126 = por %p124, %p125
    %p127 = scmp.le.s32.totalorder 1, %s9
    %p128 = scmp.lt.s32.totalorder %s9, 3
    %p129 = pnand %p127, %p128
    %p130 = pneg %p129
    // Predicated region
    $region9: #{patch_embed.3} parent=5 // pred_check
      _
    $region10: #{patch_embed.3} parent=5 // pred_check_branch
      %132 = sbr.rel (%p129) target = $region12
    $region11: #{patch_embed.3} parent=5 // pred_region
      %s133 = ssub.s32 %s9, 1
      // Predicated region
      $region13: #{patch_embed.3} parent=11 // pred_check
        %p134 = pneg %p70
      $region14: #{patch_embed.3} parent=11 // pred_check_branch
        %136 = sbr.rel (%p134) target = $region16
      $region15: #{patch_embed.3} parent=11 // pred_region
        _
      $region16: #{patch_embed.3} parent=11 // pred_fallthru
        _
      // Predicated region
      $region17: #{patch_embed.3} parent=11 // pred_check
        %p137 = pneg %p91
      $region18: #{patch_embed.3} parent=11 // pred_check_branch
        %139 = sbr.rel (%p137) target = $region20
      $region19: #{patch_embed.3} parent=11 // pred_region
        _
      $region20: #{patch_embed.3} parent=11 // pred_fallthru
        _
    $region12: #{patch_embed.3} parent=5 // pred_fallthru
      _
    %p140 = scmp.lt.s32.totalorder %s9, 2
    // Predicated region
    $region21: #{patch_embed.3} parent=5 // pred_check
      %p141 = pneg %p140
    $region22: #{patch_embed.3} parent=5 // pred_check_branch
      %143 = sbr.rel (%p141) target = $region24
    $region23: #{patch_embed.3} parent=5 // pred_region
      // Predicated region
      $region25: #{patch_embed.3} parent=23 // pred_check
        %p144 = pneg %p43
      $region26: #{patch_embed.3} parent=23 // pred_check_branch
        %146 = sbr.rel (%p144) target = $region28
      $region27: #{patch_embed.3} parent=23 // pred_region
        %p147 = scmp.lt.s32.totalorder %s16, 1
        %s148 = scalar_select %p147, %s16, 1
        %p149 = scmp.lt.s32.totalorder %s17, 0
        %s150 = scalar_select %p149, %s17, 0
        %s151 = sadd.s32 %s150, %s148
        %s152 = smul.addr %s151, 4
        %s153 = scalar_lea.vmem %s0, %s152
      $region28: #{patch_embed.3} parent=23 // pred_fallthru
        _
    $region24: #{patch_embed.3} parent=5 // pred_fallthru
      _
    %p154 = scmp.le.s32.totalorder 1, %s9
    %p155 = scmp.lt.s32.totalorder %s9, 3
    %p156 = pnand %p154, %p155
    %p157 = pneg %p156
    // Predicated region
    $region29: #{patch_embed.3} parent=5 // pred_check
      _
    $region30: #{patch_embed.3} parent=5 // pred_check_branch
      %159 = sbr.rel (%p156) target = $region32
    $region31: #{patch_embed.3} parent=5 // pred_region
      %s160 = ssub.s32 %s9, 1
      %p161 = scmp.lt.s32.totalorder %s18, 1
      %s162 = scalar_select %p161, %s18, 1
      %p163 = scmp.lt.s32.totalorder %s19, 0
      %s164 = scalar_select %p163, %s19, 0
      %s165 = sadd.s32 %s164, %s162
      %s166 = smul.addr %s165, 4
      %s167 = scalar_lea.vmem %s0, %s166
      %p168 = pneg %p49
      %p169 = pneg %p46
      %p170 = pneg %p70
      %p171 = pneg %p67
      %p172 = pneg %p91
      %p173 = pneg %p88
      %p174 = pneg %p119
      %p175 = pneg %p116
      %p176 = scmp.lt.s32.totalorder %s18, 1
      %s177 = scalar_select %p176, %s18, 1
      %p178 = scmp.lt.s32.totalorder %s19, 0
      %s179 = scalar_select %p178, %s19, 0
      %s180 = sadd.s32 %s179, %s177
      %s181 = smul.addr %s180, 8
      %s182 = scalar_lea.vmem %s3, %s181
      %p183 = scmp.lt.s32.totalorder %s18, 1
      %s184 = scalar_select %p183, %s18, 1
      %p185 = scmp.lt.s32.totalorder %s19, 0
      %s186 = scalar_select %p185, %s19, 0
      %s187 = sadd.s32 %s186, %s184
      %s188 = smul.addr %s187, 4
      %s189 = scalar_lea.vmem %s0, %s188
      %p190 = scmp.lt.s32.totalorder %s18, 1
      %s191 = scalar_select %p190, %s18, 1
      %p192 = scmp.lt.s32.totalorder %s19, 0
      %s193 = scalar_select %p192, %s19, 0
      %s194 = sadd.s32 %s193, %s191
      %s195 = smul.addr %s194, 8
      %s196 = scalar_lea.vmem %s3, %s195
      %v197 = vld [vmem:[%s1] sm:$0xff]
      %v198 = vld [vmem:[%s189] sm:$0xf]
      %v199 = vld [vmem:[%s2] sm:$0xff]
      %201 = vset.pattern.permute.xlu0 0
      %202 = vperm.xlu0 %201, %v199
      %v203 = vpop.permute.xlu0 %202
      %vm205 = vcmask 31744
      %v207 = vsel %vm205, %v197, 0
      %vm209 = vcmask 1043456
      %v211 = vsel %vm209, %v198, 0
      %213 = vmatprep.subr.mxu0 0.0
      %214 = vmatpush1.msra.mxu0 0.0
      %215 = vmatprep.subr.mxu0 0.0
      %216 = vmatpush1.msra.mxu0 0.0
      %217 = vmatprep.subr.mxu0 0.0
      %218 = vmatpush1.msra.mxu0 0.0
      %219 = vmatprep.subr.mxu0 0.0
      %220 = vmatpush1.msra.mxu0 0.0
      %221 = vmatprep.subr.mxu0 0.0
      %222 = vmatpush1.msra.mxu0 0.0
      %223 = vmatprep.subr.mxu0 0.0
      %224 = vmatpush1.msra.mxu0 0.0
      %225 = vmatprep.subr.mxu0 0.0
      %226 = vmatpush1.msra.mxu0 0.0
      %227 = vmatprep.subr.mxu0 0.0
      %228 = vmatpush1.msra.mxu0 0.0
      %229 = vmatprep.subr.mxu0 0.0
      %230 = vmatpush1.msra.mxu0 0.0
      %231 = vmatprep.subr.mxu0 0.0
      %232 = vmatpush1.msra.mxu0 0.0
      %233 = vmatprep.subr.mxu0 0.0
      %234 = vmatpush1.msra.mxu0 0.0
      %235 = vmatprep.subr.mxu0 0.0
      %236 = vmatpush1.msra.mxu0 0.0
      %237 = vmatprep.subr.mxu0 0.0
      %238 = vmatpush1.msra.mxu0 0.0
      %239 = vmatprep.subr.mxu0 0.0
      %240 = vmatpush1.msra.mxu0 0.0
      %241 = vmatprep.subr.mxu0 0.0
      %242 = vmatpush1.msra.mxu0 0.0
      %243 = vmatprep.subr.mxu0 0.0
      %244 = vmatpush1.msra.mxu0 %v211
      %245 = vmatprep.subr.mxu0 0.0
      %246 = vmatpush2.msra.mxu0 0.0
      %247 = vmatprep.subr.mxu0 0.0
      %248 = vmatpush2.msra.mxu0 0.0
      %249 = vmatprep.subr.mxu0 0.0
      %250 = vmatpush2.msra.mxu0 0.0
      %251 = vmatprep.subr.mxu0 0.0
      %252 = vmatpush2.msra.mxu0 0.0
      %253 = vmatprep.subr.mxu0 0.0
      %254 = vmatpush2.msra.mxu0 0.0
      %255 = vmatprep.subr.mxu0 0.0
      %256 = vmatpush2.msra.mxu0 0.0
      %257 = vmatprep.subr.mxu0 0.0
      %258 = vmatpush2.msra.mxu0 0.0
      %259 = vmatprep.subr.mxu0 0.0
      %260 = vmatpush2.msra.mxu0 0.0
      %261 = vmatprep.subr.mxu0 0.0
      %262 = vmatpush2.msra.mxu0 0.0
      %263 = vmatprep.subr.mxu0 0.0
      %264 = vmatpush2.msra.mxu0 0.0
      %265 = vmatprep.subr.mxu0 0.0
      %266 = vmatpush2.msra.mxu0 0.0
      %267 = vmatprep.subr.mxu0 0.0
      %268 = vmatpush2.msra.mxu0 0.0
      %269 = vmatprep.subr.mxu0 0.0
      %270 = vmatpush2.msra.mxu0 0.0
      %271 = vmatprep.subr.mxu0 0.0
      %272 = vmatpush2.msra.mxu0 0.0
      %273 = vmatprep.subr.mxu0 0.0
      %274 = vmatpush2.msra.mxu0 0.0
      %275 = vmatprep.subr.mxu0 0.0
      %276 = vmatpush2.msra.mxu0 0.0
      %277 = vmatprep.mubr.f32.mxu0 0.0
      %278 = vmatmul.mubr.f32.gmra.mxu0 %v207
      %v279 = vpop.f32.mrf.mxu0
      %v280 = vadd.f32 %v203, %v279
      %v281 = vpop.f32.mrf.mxu0
      %282 = vdwg.mxu0
      %vm283 = vcmask 523264
      %284 = vst.msk [vmem:[%s196] sm:$0xff] %vm283, %v280
      %p285 = scmp.lt.s32.totalorder %s18, 1
      %s286 = scalar_select %p285, %s18, 1
      %p287 = scmp.lt.s32.totalorder %s19, 0
      %s288 = scalar_select %p287, %s19, 0
      %s289 = sadd.s32 %s288, %s286
      %s290 = smul.addr %s289, 8
      %s291 = scalar_lea.vmem %s3, %s290
      // Predicated region
      $region33: #{patch_embed.3} parent=31 // pred_check
        %p292 = pneg %p116
      $region34: #{patch_embed.3} parent=31 // pred_check_branch
        %294 = sbr.rel (%p292) target = $region36
      $region35: #{patch_embed.3} parent=31 // pred_region
        _
      $region36: #{patch_embed.3} parent=31 // pred_fallthru
        _
    $region32: #{patch_embed.3} parent=5 // pred_fallthru
      _
    %p295 = scmp.le.s32.totalorder 2, %s9
    // Predicated region
    $region37: #{patch_embed.3} parent=5 // pred_check
      %p296 = pneg %p295
    $region38: #{patch_embed.3} parent=5 // pred_check_branch
      %298 = sbr.rel (%p296) target = $region40
    $region39: #{patch_embed.3} parent=5 // pred_region
      %s299 = ssub.s32 %s9, 2
      // Predicated region
      $region41: #{patch_embed.3} parent=39 // pred_check
        %p300 = pneg %p122
      $region42: #{patch_embed.3} parent=39 // pred_check_branch
        %302 = sbr.rel (%p300) target = $region44
      $region43: #{patch_embed.3} parent=39 // pred_region
        %p303 = scmp.lt.s32.totalorder %s20, 1
        %s304 = scalar_select %p303, %s20, 1
        %p305 = scmp.lt.s32.totalorder %s21, 0
        %s306 = scalar_select %p305, %s21, 0
        %s307 = sadd.s32 %s306, %s304
        %s308 = smul.addr %s307, 8
        %s309 = scalar_lea.vmem %s3, %s308
      $region44: #{patch_embed.3} parent=39 // pred_fallthru
        _
    $region40: #{patch_embed.3} parent=5 // pred_fallthru
      _
  $region6: #{patch_embed.3} parent=0 // loop_footer
    %s13 = sadd.s32 1, %s9
  $region7: #{patch_embed.3} parent=0 // loop_footer_branch
    %8 = sbr.rel target = $region3
  $region8: #{patch_embed.3} parent=0 // loop_exit
    _

// kernel: patch_embed.2
$region0: #{patch_embed.2}
  #allocation0 [shape = 'u32[]', space=smem, size = 0x4, offset = 0x4, fixed_abs, tag = 'smem constant byte address 0x4 - core index']
  #allocation1 [shape = 'u32[144,128]{1,0:T(1,128)}', space=vmem, size = 0x12000, scoped, tag = 'internal scratch']
  %s0 = inlined_call_operand.vmem [shape: f32[2,4,8,32], index: 0, kind: input, shape index: {}]
  %s1 = inlined_call_operand.vmem [shape: f32[32,8], index: 1, kind: input, shape index: {}]
  %s2 = inlined_call_operand.vmem [shape: f32[2,4,8,8], index: 2, kind: output, shape index: {}]
  %s3 = sld [smem:[#allocation0]]
  $region41: #{patch_embed.2} parent=0
    _
  %s5 = ssub.s32 1, %s3
  %s6 = scalar_select 0, %s5, %s3
  loop: start=0, step=1, limit=4
  $region2: #{patch_embed.2} parent=0 // loop_pre_header
    _
  $region3: #{patch_embed.2} parent=0 // loop_header
    %s8 = sphi 0, %s12
    %p9 = scmp.ge.s32.totalorder %s8, 4
    %s15 = sphi 0, %s27
    %s16 = sphi 0, %s23
    %s17 = sphi 0, %s15
    %s18 = sphi 0, %s16
    %s19 = sphi 0, %s17
    %s20 = sphi 0, %s18
    %s32 = sphi 0, %s34
    %s35 = sphi 0, %s32
    %s36 = sphi 0, %s35
    %s52 = sphi 0, %s36
    %s56 = sphi 0, %s56
    %s58 = sphi 0, %s56
    %s59 = sphi 0, %s58
    %s73 = sphi 0, %s59
    %s81 = sphi 0, %s83
    %s84 = sphi 0, %s81
    %s85 = sphi 0, %s84
    %s101 = sphi 0, %s85
  $region4: #{patch_embed.2} parent=0 // loop_header_branch
    %11 = sbr.rel (%p9) target = $region8
  $region5: #{patch_embed.2} parent=0 // loop_body
    %s13 = ssub.s32 %s8, 1
    %s14 = ssub.s32 %s8, 2
    %s21 = sadd.s32 1, %s16
    %p22 = scmp.ge.s32.totalorder %s21, 1
    %s23 = scalar_select %p22, 0, %s21
    %s24 = sadd.s32 1, %s15
    %s25 = scalar_select %p22, %s24, %s15
    %p26 = scmp.ge.s32.totalorder %s25, 2
    %s27 = scalar_select %p26, 0, %s25
    %s28 = ssub.s32 %s15, %s27
    %s29 = ssub.s32 %s16, %s23
    %s30 = sor.u32 %s28, %s29
    %p31 = scmp.eq.s32.totalorder %s30, 0
    %s33 = sadd.s32 %s32, 1
    %s34 = scalar_select %p31, %s32, %s33
    %p37 = pneg %p31
    %p38 = scmp.eq.s32.totalorder %s8, 1
    %p39 = por %p37, %p38
    %p40 = scmp.ne.s32.totalorder %s32, %s35
    %p41 = scmp.eq.s32.totalorder %s8, 0
    %p42 = por %p40, %p41
    %p43 = scmp.ne.s32.totalorder %s32, %s35
    %p44 = scmp.eq.s32.totalorder %s13, 1
    %p45 = por %p43, %p44
    %p46 = scmp.ne.s32.totalorder %s35, %s36
    %p47 = scmp.eq.s32.totalorder %s13, 0
    %p48 = por %p46, %p47
    %p49 = scmp.ne.s32.totalorder %s35, %s36
    %p50 = scmp.eq.s32.totalorder %s14, 1
    %p51 = por %p49, %p50
    %p53 = scmp.ne.s32.totalorder %s36, %s52
    %p54 = scmp.eq.s32.totalorder %s14, 0
    %p55 = por %p53, %p54
    %s57 = sadd.s32 %s56, 1
    %p60 = scmp.eq.s32.totalorder %s8, 1
    %p61 = scmp.ne.s32.totalorder %s56, %s58
    %p62 = scmp.eq.s32.totalorder %s8, 0
    %p63 = por %p61, %p62
    %p64 = scmp.ne.s32.totalorder %s56, %s58
    %p65 = scmp.eq.s32.totalorder %s13, 1
    %p66 = por %p64, %p65
    %p67 = scmp.ne.s32.totalorder %s58, %s59
    %p68 = scmp.eq.s32.totalorder %s13, 0
    %p69 = por %p67, %p68
    %p70 = scmp.ne.s32.totalorder %s58, %s59
    %p71 = scmp.eq.s32.totalorder %s14, 1
    %p72 = por %p70, %p71
    %p74 = scmp.ne.s32.totalorder %s59, %s73
    %p75 = scmp.eq.s32.totalorder %s14, 0
    %p76 = por %p74, %p75
    %s77 = ssub.s32 %s15, %s27
    %s78 = ssub.s32 %s16, %s23
    %s79 = sor.u32 %s77, %s78
    %p80 = scmp.eq.s32.totalorder %s79, 0
    %s82 = sadd.s32 %s81, 1
    %s83 = scalar_select %p80, %s81, %s82
    %p86 = pneg %p80
    %p87 = scmp.eq.s32.totalorder %s8, 1
    %p88 = por %p86, %p87
    %p89 = scmp.ne.s32.totalorder %s81, %s84
    %p90 = scmp.eq.s32.totalorder %s8, 0
    %p91 = por %p89, %p90
    %p92 = scmp.ne.s32.totalorder %s81, %s84
    %p93 = scmp.eq.s32.totalorder %s13, 1
    %p94 = por %p92, %p93
    %p95 = scmp.ne.s32.totalorder %s84, %s85
    %p96 = scmp.eq.s32.totalorder %s13, 0
    %p97 = por %p95, %p96
    %p98 = scmp.ne.s32.totalorder %s84, %s85
    %p99 = scmp.eq.s32.totalorder %s14, 1
    %p100 = por %p98, %p99
    %p102 = scmp.ne.s32.totalorder %s85, %s101
    %p103 = scmp.eq.s32.totalorder %s14, 0
    %p104 = por %p102, %p103
    %p105 = scmp.le.s32.totalorder 1, %s8
    %p106 = scmp.lt.s32.totalorder %s8, 3
    %p107 = pnand %p105, %p106
    %p108 = pneg %p107
    // Predicated region
    $region9: #{patch_embed.2} parent=5 // pred_check
      _
    $region10: #{patch_embed.2} parent=5 // pred_check_branch
      %110 = sbr.rel (%p107) target = $region12
    $region11: #{patch_embed.2} parent=5 // pred_region
      %s111 = ssub.s32 %s8, 1
      // Predicated region
      $region13: #{patch_embed.2} parent=11 // pred_check
        %p112 = pneg %p69
      $region14: #{patch_embed.2} parent=11 // pred_check_branch
        %114 = sbr.rel (%p112) target = $region16
      $region15: #{patch_embed.2} parent=11 // pred_region
        _
      $region16: #{patch_embed.2} parent=11 // pred_fallthru
        _
    $region12: #{patch_embed.2} parent=5 // pred_fallthru
      _
    %p115 = scmp.lt.s32.totalorder %s8, 2
    // Predicated region
    $region17: #{patch_embed.2} parent=5 // pred_check
      %p116 = pneg %p115
    $region18: #{patch_embed.2} parent=5 // pred_check_branch
      %118 = sbr.rel (%p116) target = $region20
    $region19: #{patch_embed.2} parent=5 // pred_region
      // Predicated region
      $region21: #{patch_embed.2} parent=19 // pred_check
        %p119 = pneg %p42
      $region22: #{patch_embed.2} parent=19 // pred_check_branch
        %121 = sbr.rel (%p119) target = $region24
      $region23: #{patch_embed.2} parent=19 // pred_region
        %p122 = scmp.lt.s32.totalorder %s15, 1
        %s123 = scalar_select %p122, %s15, 1
        %p124 = scmp.lt.s32.totalorder %s16, 0
        %s125 = scalar_select %p124, %s16, 0
        %s126 = smul.addr %s123, 4
        %s127 = sadd.s32 %s125, %s126
        %s128 = smul.addr %s127, 8
        %s129 = scalar_lea.vmem %s0, %s128
      $region24: #{patch_embed.2} parent=19 // pred_fallthru
        _
    $region20: #{patch_embed.2} parent=5 // pred_fallthru
      _
    %p130 = scmp.le.s32.totalorder 1, %s8
    %p131 = scmp.lt.s32.totalorder %s8, 3
    %p132 = pnand %p130, %p131
    %p133 = pneg %p132
    // Predicated region
    $region25: #{patch_embed.2} parent=5 // pred_check
      _
    $region26: #{patch_embed.2} parent=5 // pred_check_branch
      %135 = sbr.rel (%p132) target = $region28
    $region27: #{patch_embed.2} parent=5 // pred_region
      %s136 = ssub.s32 %s8, 1
      %p137 = scmp.lt.s32.totalorder %s17, 1
      %s138 = scalar_select %p137, %s17, 1
      %p139 = scmp.lt.s32.totalorder %s18, 0
      %s140 = scalar_select %p139, %s18, 0
      %s141 = smul.addr %s138, 4
      %s142 = sadd.s32 %s140, %s141
      %s143 = smul.addr %s142, 8
      %s144 = scalar_lea.vmem %s0, %s143
      %p145 = pneg %p48
      %p146 = pneg %p45
      %p147 = pneg %p69
      %p148 = pneg %p66
      %p149 = pneg %p97
      %p150 = pneg %p94
      %p151 = scmp.lt.s32.totalorder %s17, 1
      %s152 = scalar_select %p151, %s17, 1
      %p153 = scmp.lt.s32.totalorder %s18, 0
      %s154 = scalar_select %p153, %s18, 0
      %s155 = smul.addr %s152, 4
      %s156 = sadd.s32 %s154, %s155
      %s157 = smul.addr %s156, 8
      %s158 = scalar_lea.vmem %s2, %s157
      %p159 = scmp.lt.s32.totalorder %s17, 1
      %s160 = scalar_select %p159, %s17, 1
      %p161 = scmp.lt.s32.totalorder %s18, 0
      %s162 = scalar_select %p161, %s18, 0
      %s163 = smul.addr %s160, 4
      %s164 = sadd.s32 %s162, %s163
      %s165 = smul.addr %s164, 8
      %s166 = scalar_lea.vmem %s0, %s165
      %p167 = scmp.lt.s32.totalorder %s17, 1
      %s168 = scalar_select %p167, %s17, 1
      %p169 = scmp.lt.s32.totalorder %s18, 0
      %s170 = scalar_select %p169, %s18, 0
      %s171 = smul.addr %s168, 4
      %s172 = sadd.s32 %s170, %s171
      %s173 = smul.addr %s172, 8
      %s174 = scalar_lea.vmem %s2, %s173
      %v175 = vld [vmem:[%s166] sm:$0xff]
      %v176 = vld [vmem:[%s166 + $0x8] sm:$0xff]
      %v177 = vld [vmem:[%s166 + $0x10] sm:$0xff]
      %v178 = vld [vmem:[%s166 + $0x18] sm:$0xff]
      %v179 = vld [vmem:[%s1] sm:$0xff]
      %v180 = vld [vmem:[%s1 + $0x8] sm:$0xff]
      %v181 = vld [vmem:[%s1 + $0x10] sm:$0xff]
      %v182 = vld [vmem:[%s1 + $0x18] sm:$0xff]
      %vm183 = vcmask 261120
      %v185 = vsel %vm183, %v175, 0
      %v188 = vsel %vm183, %v176, 0
      %v191 = vsel %vm183, %v177, 0
      %v194 = vsel %vm183, %v178, 0
      %196 = vmatprep.subr.mxu0 0.0
      %197 = vmatpush1.msra.mxu0 0.0
      %198 = vmatprep.subr.mxu0 0.0
      %199 = vmatpush1.msra.mxu0 0.0
      %200 = vmatprep.subr.mxu0 0.0
      %201 = vmatpush1.msra.mxu0 0.0
      %202 = vmatprep.subr.mxu0 0.0
      %203 = vmatpush1.msra.mxu0 0.0
      %204 = vmatprep.subr.mxu0 0.0
      %205 = vmatpush1.msra.mxu0 0.0
      %206 = vmatprep.subr.mxu0 0.0
      %207 = vmatpush1.msra.mxu0 0.0
      %208 = vmatprep.subr.mxu0 0.0
      %209 = vmatpush1.msra.mxu0 0.0
      %210 = vmatprep.subr.mxu0 0.0
      %211 = vmatpush1.msra.mxu0 0.0
      %212 = vmatprep.subr.mxu0 0.0
      %213 = vmatpush1.msra.mxu0 0.0
      %214 = vmatprep.subr.mxu0 0.0
      %215 = vmatpush1.msra.mxu0 0.0
      %216 = vmatprep.subr.mxu0 0.0
      %217 = vmatpush1.msra.mxu0 0.0
      %218 = vmatprep.subr.mxu0 0.0
      %219 = vmatpush1.msra.mxu0 0.0
      %220 = vmatprep.subr.mxu0 0.0
      %221 = vmatpush1.msra.mxu0 %v182
      %222 = vmatprep.subr.mxu0 0.0
      %223 = vmatpush1.msra.mxu0 %v181
      %224 = vmatprep.subr.mxu0 0.0
      %225 = vmatpush1.msra.mxu0 %v180
      %226 = vmatprep.subr.mxu0 0.0
      %227 = vmatpush1.msra.mxu0 %v179
      %228 = vmatprep.subr.mxu0 0.0
      %229 = vmatpush2.msra.mxu0 0.0
      %230 = vmatprep.subr.mxu0 0.0
      %231 = vmatpush2.msra.mxu0 0.0
      %232 = vmatprep.subr.mxu0 0.0
      %233 = vmatpush2.msra.mxu0 0.0
      %234 = vmatprep.subr.mxu0 0.0
      %235 = vmatpush2.msra.mxu0 0.0
      %236 = vmatprep.subr.mxu0 0.0
      %237 = vmatpush2.msra.mxu0 0.0
      %238 = vmatprep.subr.mxu0 0.0
      %239 = vmatpush2.msra.mxu0 0.0
      %240 = vmatprep.subr.mxu0 0.0
      %241 = vmatpush2.msra.mxu0 0.0
      %242 = vmatprep.subr.mxu0 0.0
      %243 = vmatpush2.msra.mxu0 0.0
      %244 = vmatprep.subr.mxu0 0.0
      %245 = vmatpush2.msra.mxu0 0.0
      %246 = vmatprep.subr.mxu0 0.0
      %247 = vmatpush2.msra.mxu0 0.0
      %248 = vmatprep.subr.mxu0 0.0
      %249 = vmatpush2.msra.mxu0 0.0
      %250 = vmatprep.subr.mxu0 0.0
      %251 = vmatpush2.msra.mxu0 0.0
      %252 = vmatprep.subr.mxu0 0.0
      %253 = vmatpush2.msra.mxu0 0.0
      %254 = vmatprep.subr.mxu0 0.0
      %255 = vmatpush2.msra.mxu0 0.0
      %256 = vmatprep.subr.mxu0 0.0
      %257 = vmatpush2.msra.mxu0 0.0
      %258 = vmatprep.subr.mxu0 0.0
      %259 = vmatpush2.msra.mxu0 0.0
      %260 = vmatprep.mubr.f32.mxu0 0.0
      %261 = vmatmul.mubr.f32.gmra.mxu0 %v185
      %v262 = vpop.f32.mrf.mxu0
      %v263 = vadd.f32 0.0, %v262
      %v264 = vpop.f32.mrf.mxu0
      %265 = vmatprep.mubr.f32.mxu0 0.0
      %266 = vmatmul.mubr.f32.gmra.mxu0 %v188
      %v267 = vpop.f32.mrf.mxu0
      %v268 = vadd.f32 0.0, %v267
      %v269 = vpop.f32.mrf.mxu0
      %270 = vmatprep.mubr.f32.mxu0 0.0
      %271 = vmatmul.mubr.f32.gmra.mxu0 %v191
      %v272 = vpop.f32.mrf.mxu0
      %v273 = vadd.f32 0.0, %v272
      %v274 = vpop.f32.mrf.mxu0
      %275 = vmatprep.mubr.f32.mxu0 0.0
      %276 = vmatmul.mubr.f32.gmra.mxu0 %v194
      %v277 = vpop.f32.mrf.mxu0
      %v278 = vadd.f32 0.0, %v277
      %v279 = vpop.f32.mrf.mxu0
      %280 = vdwg.mxu0
      %vm281 = vcmask 64512
      %282 = vst.msk [vmem:[%s174] sm:$0xff] %vm281, %v263
      %283 = vst.msk [vmem:[%s174 + $0x8] sm:$0xff] %vm281, %v268
      %284 = vst.msk [vmem:[%s174 + $0x10] sm:$0xff] %vm281, %v273
      %285 = vst.msk [vmem:[%s174 + $0x18] sm:$0xff] %vm281, %v278
      %p286 = scmp.lt.s32.totalorder %s17, 1
      %s287 = scalar_select %p286, %s17, 1
      %p288 = scmp.lt.s32.totalorder %s18, 0
      %s289 = scalar_select %p288, %s18, 0
      %s290 = smul.addr %s287, 4
      %s291 = sadd.s32 %s289, %s290
      %s292 = smul.addr %s291, 8
      %s293 = scalar_lea.vmem %s2, %s292
      // Predicated region
      $region29: #{patch_embed.2} parent=27 // pred_check
        %p294 = pneg %p94
      $region30: #{patch_embed.2} parent=27 // pred_check_branch
        %296 = sbr.rel (%p294) target = $region32
      $region31: #{patch_embed.2} parent=27 // pred_region
        _
      $region32: #{patch_embed.2} parent=27 // pred_fallthru
        _
    $region28: #{patch_embed.2} parent=5 // pred_fallthru
      _
    %p297 = scmp.le.s32.totalorder 2, %s8
    // Predicated region
    $region33: #{patch_embed.2} parent=5 // pred_check
      %p298 = pneg %p297
    $region34: #{patch_embed.2} parent=5 // pred_check_branch
      %300 = sbr.rel (%p298) target = $region36
    $region35: #{patch_embed.2} parent=5 // pred_region
      %s301 = ssub.s32 %s8, 2
      // Predicated region
      $region37: #{patch_embed.2} parent=35 // pred_check
        %p302 = pneg %p100
      $region38: #{patch_embed.2} parent=35 // pred_check_branch
        %304 = sbr.rel (%p302) target = $region40
      $region39: #{patch_embed.2} parent=35 // pred_region
        %p305 = scmp.lt.s32.totalorder %s19, 1
        %s306 = scalar_select %p305, %s19, 1
        %p307 = scmp.lt.s32.totalorder %s20, 0
        %s308 = scalar_select %p307, %s20, 0
        %s309 = smul.addr %s306, 4
        %s310 = sadd.s32 %s308, %s309
        %s311 = smul.addr %s310, 8
        %s312 = scalar_lea.vmem %s2, %s311
      $region40: #{patch_embed.2} parent=35 // pred_fallthru
        _
    $region36: #{patch_embed.2} parent=5 // pred_fallthru
      _
  $region6: #{patch_embed.2} parent=0 // loop_footer
    %s12 = sadd.s32 1, %s8
  $region7: #{patch_embed.2} parent=0 // loop_footer_branch
    %7 = sbr.rel target = $region3
  $region8: #{patch_embed.2} parent=0 // loop_exit
    _

</llo_original>
